<compile_context>
chip_gen: v5e
topology: v5e:2x2
jax: 0.10.0
libtpu: 0.0.40
codegen_flags: <defaults>
</compile_context>

<pallas_src>
import jax
import jax.numpy as jnp
from jax.experimental import pallas as pl
from jax.experimental.pallas import tpu as pltpu


_COLOR_DIM = 15       # color_generator output features (-> (B, 5, 3))
_TYPO_DIM = 64        # typography_generator output features
_HEAD2_PAD = 128      # lane-dense padded width for the fused color|typo slab


# ----------------------------------------------------------------------------
# Pallas kernel: layout MLP + fused (color|typography) heads, one batch tile
# per grid step, all weights VMEM-resident across the batch grid.
# ----------------------------------------------------------------------------
def image_layout_kernel(
    x_ref,
    # layout_generator: Linear(H,H) -> ReLU -> Dropout(eval) -> Linear(H,L) -> ReLU -> Linear(L,F)
    w1_ref, b1_ref, w2_ref, b2_ref, w3_ref, b3_ref,
    # fused heads: Linear(H,H) [= wc1|wt1] -> ReLU -> Linear(H,128) [block-diag wc2/wt2, zero-padded]
    wh1_ref, bh1_ref, wh2_ref, bh2_ref,
    # outputs
    layout_ref, head_ref,
):
    x = x_ref[...]
    xb = x.astype(jnp.bfloat16)

    # ---- layout head ----
    h1 = jnp.dot(xb, w1_ref[...], preferred_element_type=jnp.float32) + b1_ref[...]
    h1 = jnp.maximum(h1, 0.0)
    # TODO(synk): nn.Dropout(p) is identity in eval mode; training-mode RNG mask
    # is intentionally not emulated here.
    h2 = jnp.dot(h1.astype(jnp.bfloat16), w2_ref[...],
                 preferred_element_type=jnp.float32) + b2_ref[...]
    h2 = jnp.maximum(h2, 0.0)
    layout_ref[...] = (
        jnp.dot(h2.astype(jnp.bfloat16), w3_ref[...],
                preferred_element_type=jnp.float32) + b3_ref[...]
    )

    # ---- fused color + typography heads ----
    hh = jnp.dot(xb, wh1_ref[...], preferred_element_type=jnp.float32) + bh1_ref[...]
    hh = jnp.maximum(hh, 0.0)
    z = jnp.dot(hh.astype(jnp.bfloat16), wh2_ref[...],
                preferred_element_type=jnp.float32) + bh2_ref[...]
    # Sigmoid on the color lanes only (lanes [0, 15)); typography/pad lanes pass
    # through.  Whole slab is a single lane-dense 128-wide store.
    lane = jax.lax.broadcasted_iota(jnp.int32, z.shape, dimension=1)
    head_ref[...] = jnp.where(lane < _COLOR_DIM, jax.nn.sigmoid(z), z)


# ----------------------------------------------------------------------------
# Host-side glue: fuse/pad/cast parameters into the kernel's packed layout.
# ----------------------------------------------------------------------------
def pack_params(p):
    H = p["w1"].shape[0]
    Hh = H // 2

    # Fuse the two H -> H/2 first-layer head weights into one H -> H matmul.
    wh1 = jnp.concatenate([p["wc1"], p["wt1"]], axis=1)          # (H, H)
    bh1 = jnp.concatenate([p["bc1"], p["bt1"]], axis=1)          # (1, H)

    # Block-diagonal, lane-padded second-stage head weight: cols [0,15) <- wc2
    # (driven by the color half of hh), cols [15,79) <- wt2 (typography half),
    # cols [79,128) zero padding.
    wh2 = jnp.zeros((H, _HEAD2_PAD), jnp.float32)
    wh2 = wh2.at[:Hh, :_COLOR_DIM].set(p["wc2"])
    wh2 = wh2.at[Hh:, _COLOR_DIM:_COLOR_DIM + _TYPO_DIM].set(p["wt2"])
    bh2 = jnp.zeros((1, _HEAD2_PAD), jnp.float32)
    bh2 = bh2.at[:, :_COLOR_DIM].set(p["bc2"])
    bh2 = bh2.at[:, _COLOR_DIM:_COLOR_DIM + _TYPO_DIM].set(p["bt2"])

    bf16 = jnp.bfloat16
    return {
        "w1": p["w1"].astype(bf16), "b1": p["b1"],
        "w2": p["w2"].astype(bf16), "b2": p["b2"],
        "w3": p["w3"].astype(bf16), "b3": p["b3"],
        "wh1": wh1.astype(bf16), "bh1": bh1,
        "wh2": wh2.astype(bf16), "bh2": bh2,
    }


def image_layout_generator(x, kp, *, batch_tile=256):
    """Runs the fused Pallas kernel; wrapper does output slicing/reshape (glue)."""
    B, H = x.shape
    L = kp["w2"].shape[1]      # layout_dim
    F = kp["w3"].shape[1]      # image_feature_dim

    # Batch tile: full batch if small, else 256-row tiles (safe for 16 MiB
    # scoped VMEM on v5e and 64 MiB physical VMEM on v7x).
    TB = B if B <= batch_tile else batch_tile
    grid = (pl.cdiv(B, TB),)

    batch_map = lambda i: (i, 0)
    weight_map = lambda i: (0, 0)     # weights resident across batch tiles
    full = lambda a: pl.BlockSpec(a.shape, weight_map)

    in_order = [
        x,
        kp["w1"], kp["b1"], kp["w2"], kp["b2"], kp["w3"], kp["b3"],
        kp["wh1"], kp["bh1"], kp["wh2"], kp["bh2"],
    ]
    in_specs = [pl.BlockSpec((TB, H), batch_map)] + [full(a) for a in in_order[1:]]
    out_specs = (
        pl.BlockSpec((TB, F), batch_map),
        pl.BlockSpec((TB, _HEAD2_PAD), batch_map),
    )

    # Advisory cost estimate so XLA can overlap this DMA-bound call.
    flops = 2 * B * (H * H + H * L + L * F + H * H + H * _HEAD2_PAD)
    weight_bytes = sum(int(a.size) * a.dtype.itemsize for a in in_order[1:])
    io_bytes = B * (H + F + _HEAD2_PAD) * 4
    cost = pl.CostEstimate(
        flops=flops,
        transcendentals=B * _HEAD2_PAD,
        bytes_accessed=weight_bytes + io_bytes,
    )

    layout_features, head = pl.pallas_call(
        image_layout_kernel,
        grid=grid,
        out_shape=(
            jax.ShapeDtypeStruct((B, F), jnp.float32),
            jax.ShapeDtypeStruct((B, _HEAD2_PAD), jnp.float32),
        ),
        in_specs=in_specs,
        out_specs=out_specs,
        compiler_params=pltpu.CompilerParams(
            dimension_semantics=("parallel",),
            vmem_limit_bytes=32 * 1024 * 1024,
        ),
        cost_estimate=cost,
    )(*in_order)

    # color_logits.view(-1, 5, 3) then sigmoid (sigmoid already applied in-kernel)
    color_scheme = head[:, :_COLOR_DIM].reshape(-1, 5, 3)
    typography_params = head[:, _COLOR_DIM:_COLOR_DIM + _TYPO_DIM]
    return {
        "layout_features": layout_features,
        "color_scheme": color_scheme,
        "typography_params": typography_params,
    }


# ----------------------------------------------------------------------------
# Deterministic parameter initialization (PyTorch-like uniform(-1/sqrt(fan_in)))
# in the original (unfused) layout, mirroring the nn.Module structure.
# ----------------------------------------------------------------------------
def init_params(key, hidden_size, layout_dim, image_feature_dim):
    def linear(key, fan_in, fan_out):
        kw, kb = jax.random.split(key)
        bound = 1.0 / jnp.sqrt(fan_in)
        w = jax.random.uniform(kw, (fan_in, fan_out), jnp.float32, -bound, bound)
        b = jax.random.uniform(kb, (1, fan_out), jnp.float32, -bound, bound)
        return w, b

    keys = jax.random.split(key, 7)
    H, L, F = hidden_size, layout_dim, image_feature_dim
    p = {}
    # layout_generator
    p["w1"], p["b1"] = linear(keys[0], H, H)
    p["w2"], p["b2"] = linear(keys[1], H, L)
    p["w3"], p["b3"] = linear(keys[2], L, F)
    # color_generator
    p["wc1"], p["bc1"] = linear(keys[3], H, H // 2)
    p["wc2"], p["bc2"] = linear(keys[4], H // 2, _COLOR_DIM)
    # typography_generator
    p["wt1"], p["bt1"] = linear(keys[5], H, H // 2)
    p["wt2"], p["bt2"] = linear(keys[6], H // 2, _TYPO_DIM)
    return p


# Pure-JAX reference (mirrors the PyTorch forward in eval mode, with the same
# bf16 weight / bf16 activation-input, f32-accumulate numerics as the kernel).
def reference_forward(x, p):
    bf16 = jnp.bfloat16

    def lin(a, w, b):
        return jnp.dot(a.astype(bf16), w.astype(bf16),
                       preferred_element_type=jnp.float32) + b

    relu = lambda v: jnp.maximum(v, 0.0)
    h = relu(lin(x, p["w1"], p["b1"]))
    h = relu(lin(h, p["w2"], p["b2"]))
    layout_features = lin(h, p["w3"], p["b3"])
    c = relu(lin(x, p["wc1"], p["bc1"]))
    color = jax.nn.sigmoid(lin(c, p["wc2"], p["bc2"]).reshape(-1, 5, 3))
    t = relu(lin(x, p["wt1"], p["bt1"]))
    typo = lin(t, p["wt2"], p["bt2"])
    return {"layout_features": layout_features, "color_scheme": color,
            "typography_params": typo}


if __name__ == "__main__":
    # Small shapes consistent with the module's forward: (batch, hidden_size)
    batch = 2
    hidden_size = 32          # scaled-down stand-in for 768
    layout_dim = 16           # scaled-down stand-in for 256
    image_feature_dim = 32    # scaled-down stand-in for 512

    key = jax.random.PRNGKey(0)
    k_x, k_p = jax.random.split(key)
    x = jax.random.normal(k_x, (batch, hidden_size), jnp.float32)
    params = init_params(k_p, hidden_size, layout_dim, image_feature_dim)
    packed = pack_params(params)

    out = image_layout_generator(x, packed)
    out = jax.block_until_ready(out)

    ref = reference_forward(x, params)
    for name in ("layout_features", "color_scheme", "typography_params"):
        assert out[name].shape == ref[name].shape, name
        assert jnp.allclose(out[name], ref[name], atol=2e-2, rtol=2e-2), name

    print("KERNEL_OK")
</pallas_src>

<mosaic_0001>
module attributes {stable_mosaic.version = 11 : i64} {
  func.func @image_layout_kernel(%arg0: i32, %arg1: memref<2x32xf32, #tpu.memory_space<vmem>>, %arg2: memref<32x32xbf16, #tpu.memory_space<vmem>>, %arg3: memref<1x32xf32, #tpu.memory_space<vmem>>, %arg4: memref<32x16xbf16, #tpu.memory_space<vmem>>, %arg5: memref<1x16xf32, #tpu.memory_space<vmem>>, %arg6: memref<16x32xbf16, #tpu.memory_space<vmem>>, %arg7: memref<1x32xf32, #tpu.memory_space<vmem>>, %arg8: memref<32x32xbf16, #tpu.memory_space<vmem>>, %arg9: memref<1x32xf32, #tpu.memory_space<vmem>>, %arg10: memref<32x128xbf16, #tpu.memory_space<vmem>>, %arg11: memref<1x128xf32, #tpu.memory_space<vmem>>, %arg12: memref<2x32xf32, #tpu.memory_space<vmem>>, %arg13: memref<2x128xf32, #tpu.memory_space<vmem>>) attributes {dimension_semantics = [#tpu.dimension_semantics<parallel>], iteration_bounds = array<i64: 1>, scalar_prefetch = 0 : i64, scratch_operands = 0 : i64, tpu.core_type = #tpu.core_type<tc>, window_params = [{transform_indices = @transform_0, window_bounds = array<i64: 2, 32>}, {pipeline_mode = #tpu.pipeline_mode<synchronous>, transform_indices = @transform_1, window_bounds = array<i64: 32, 32>}, {pipeline_mode = #tpu.pipeline_mode<synchronous>, transform_indices = @transform_2, window_bounds = array<i64: 1, 32>}, {pipeline_mode = #tpu.pipeline_mode<synchronous>, transform_indices = @transform_3, window_bounds = array<i64: 32, 16>}, {pipeline_mode = #tpu.pipeline_mode<synchronous>, transform_indices = @transform_4, window_bounds = array<i64: 1, 16>}, {pipeline_mode = #tpu.pipeline_mode<synchronous>, transform_indices = @transform_5, window_bounds = array<i64: 16, 32>}, {pipeline_mode = #tpu.pipeline_mode<synchronous>, transform_indices = @transform_6, window_bounds = array<i64: 1, 32>}, {pipeline_mode = #tpu.pipeline_mode<synchronous>, transform_indices = @transform_7, window_bounds = array<i64: 32, 32>}, {pipeline_mode = #tpu.pipeline_mode<synchronous>, transform_indices = @transform_8, window_bounds = array<i64: 1, 32>}, {pipeline_mode = #tpu.pipeline_mode<synchronous>, transform_indices = @transform_9, window_bounds = array<i64: 32, 128>}, {pipeline_mode = #tpu.pipeline_mode<synchronous>, transform_indices = @transform_10, window_bounds = array<i64: 1, 128>}, {transform_indices = @transform_11, window_bounds = array<i64: 2, 32>}, {transform_indices = @transform_12, window_bounds = array<i64: 2, 128>}]} {
    %c0 = arith.constant 0 : index
    %c0_0 = arith.constant 0 : index
    %0 = vector.load %arg1[%c0, %c0_0] : memref<2x32xf32, #tpu.memory_space<vmem>>, vector<2x32xf32>
    %1 = arith.truncf %0 : vector<2x32xf32> to vector<2x32xbf16>
    %c0_1 = arith.constant 0 : index
    %c0_2 = arith.constant 0 : index
    %2 = vector.load %arg2[%c0_1, %c0_2] : memref<32x32xbf16, #tpu.memory_space<vmem>>, vector<32x32xbf16>
    %cst = arith.constant dense<0.000000e+00> : vector<2x32xf32>
    %3 = tpu.matmul %1, %2, %cst {dimension_numbers = #tpu.dot_dimension_numbers<[1], [0], [0], [1], [0, 0, 1, 1], [], []>} : vector<2x32xbf16>, vector<32x32xbf16>, vector<2x32xf32> -> vector<2x32xf32>
    %c0_3 = arith.constant 0 : index
    %c0_4 = arith.constant 0 : index
    %4 = vector.load %arg3[%c0_3, %c0_4] : memref<1x32xf32, #tpu.memory_space<vmem>>, vector<1x32xf32>
    %5 = vector.broadcast %4 : vector<1x32xf32> to vector<2x32xf32>
    %6 = arith.addf %3, %5 : vector<2x32xf32>
    %cst_5 = arith.constant 0.000000e+00 : f32
    %7 = vector.broadcast %cst_5 : f32 to vector<2x32xf32>
    %8 = arith.maximumf %6, %7 : vector<2x32xf32>
    %9 = arith.truncf %8 : vector<2x32xf32> to vector<2x32xbf16>
    %c0_6 = arith.constant 0 : index
    %c0_7 = arith.constant 0 : index
    %10 = vector.load %arg4[%c0_6, %c0_7] : memref<32x16xbf16, #tpu.memory_space<vmem>>, vector<32x16xbf16>
    %cst_8 = arith.constant dense<0.000000e+00> : vector<2x16xf32>
    %11 = tpu.matmul %9, %10, %cst_8 {dimension_numbers = #tpu.dot_dimension_numbers<[1], [0], [0], [1], [0, 0, 1, 1], [], []>} : vector<2x32xbf16>, vector<32x16xbf16>, vector<2x16xf32> -> vector<2x16xf32>
    %c0_9 = arith.constant 0 : index
    %c0_10 = arith.constant 0 : index
    %12 = vector.load %arg5[%c0_9, %c0_10] : memref<1x16xf32, #tpu.memory_space<vmem>>, vector<1x16xf32>
    %13 = vector.broadcast %12 : vector<1x16xf32> to vector<2x16xf32>
    %14 = arith.addf %11, %13 : vector<2x16xf32>
    %cst_11 = arith.constant 0.000000e+00 : f32
    %15 = vector.broadcast %cst_11 : f32 to vector<2x16xf32>
    %16 = arith.maximumf %14, %15 : vector<2x16xf32>
    %17 = arith.truncf %16 : vector<2x16xf32> to vector<2x16xbf16>
    %c0_12 = arith.constant 0 : index
    %c0_13 = arith.constant 0 : index
    %18 = vector.load %arg6[%c0_12, %c0_13] : memref<16x32xbf16, #tpu.memory_space<vmem>>, vector<16x32xbf16>
    %cst_14 = arith.constant dense<0.000000e+00> : vector<2x32xf32>
    %19 = tpu.matmul %17, %18, %cst_14 {dimension_numbers = #tpu.dot_dimension_numbers<[1], [0], [0], [1], [0, 0, 1, 1], [], []>} : vector<2x16xbf16>, vector<16x32xbf16>, vector<2x32xf32> -> vector<2x32xf32>
    %c0_15 = arith.constant 0 : index
    %c0_16 = arith.constant 0 : index
    %20 = vector.load %arg7[%c0_15, %c0_16] : memref<1x32xf32, #tpu.memory_space<vmem>>, vector<1x32xf32>
    %21 = vector.broadcast %20 : vector<1x32xf32> to vector<2x32xf32>
    %22 = arith.addf %19, %21 : vector<2x32xf32>
    %c0_17 = arith.constant 0 : index
    %c0_18 = arith.constant 0 : index
    %23 = vector.load %arg12[%c0_17, %c0_18] : memref<2x32xf32, #tpu.memory_space<vmem>>, vector<2x32xf32>
    tpu.vector_store %arg12[%c0_17, %c0_18], %22 {strides = array<i32>} : memref<2x32xf32, #tpu.memory_space<vmem>>, vector<2x32xf32>,
    %c0_19 = arith.constant 0 : index
    %c0_20 = arith.constant 0 : index
    %24 = vector.load %arg8[%c0_19, %c0_20] : memref<32x32xbf16, #tpu.memory_space<vmem>>, vector<32x32xbf16>
    %cst_21 = arith.constant dense<0.000000e+00> : vector<2x32xf32>
    %25 = tpu.matmul %1, %24, %cst_21 {dimension_numbers = #tpu.dot_dimension_numbers<[1], [0], [0], [1], [0, 0, 1, 1], [], []>} : vector<2x32xbf16>, vector<32x32xbf16>, vector<2x32xf32> -> vector<2x32xf32>
    %c0_22 = arith.constant 0 : index
    %c0_23 = arith.constant 0 : index
    %26 = vector.load %arg9[%c0_22, %c0_23] : memref<1x32xf32, #tpu.memory_space<vmem>>, vector<1x32xf32>
    %27 = vector.broadcast %26 : vector<1x32xf32> to vector<2x32xf32>
    %28 = arith.addf %25, %27 : vector<2x32xf32>
    %cst_24 = arith.constant 0.000000e+00 : f32
    %29 = vector.broadcast %cst_24 : f32 to vector<2x32xf32>
    %30 = arith.maximumf %28, %29 : vector<2x32xf32>
    %31 = arith.truncf %30 : vector<2x32xf32> to vector<2x32xbf16>
    %c0_25 = arith.constant 0 : index
    %c0_26 = arith.constant 0 : index
    %32 = vector.load %arg10[%c0_25, %c0_26] : memref<32x128xbf16, #tpu.memory_space<vmem>>, vector<32x128xbf16>
    %cst_27 = arith.constant dense<0.000000e+00> : vector<2x128xf32>
    %33 = tpu.matmul %31, %32, %cst_27 {dimension_numbers = #tpu.dot_dimension_numbers<[1], [0], [0], [1], [0, 0, 1, 1], [], []>} : vector<2x32xbf16>, vector<32x128xbf16>, vector<2x128xf32> -> vector<2x128xf32>
    %c0_28 = arith.constant 0 : index
    %c0_29 = arith.constant 0 : index
    %34 = vector.load %arg11[%c0_28, %c0_29] : memref<1x128xf32, #tpu.memory_space<vmem>>, vector<1x128xf32>
    %35 = vector.broadcast %34 : vector<1x128xf32> to vector<2x128xf32>
    %36 = arith.addf %33, %35 : vector<2x128xf32>
    %37 = tpu.iota {dimensions = array<i32: 1>} : vector<2x128xi32>
    %c15_i32 = arith.constant 15 : i32
    %38 = vector.broadcast %c15_i32 : i32 to vector<2x128xi32>
    %39 = arith.cmpi slt, %37, %38 : vector<2x128xi32>
    %40 = arith.negf %36 : vector<2x128xf32>
    %41 = math.exp %40 : vector<2x128xf32>
    %cst_30 = arith.constant 1.000000e+00 : f32
    %42 = vector.broadcast %cst_30 : f32 to vector<2x128xf32>
    %43 = arith.addf %42, %41 : vector<2x128xf32>
    %44 = arith.divf %42, %43 : vector<2x128xf32>
    %45 = arith.select %39, %44, %36 : vector<2x128xi1>, vector<2x128xf32>
    %c0_31 = arith.constant 0 : index
    %c0_32 = arith.constant 0 : index
    %46 = vector.load %arg13[%c0_31, %c0_32] : memref<2x128xf32, #tpu.memory_space<vmem>>, vector<2x128xf32>
    tpu.vector_store %arg13[%c0_31, %c0_32], %45 {strides = array<i32>} : memref<2x128xf32, #tpu.memory_space<vmem>>, vector<2x128xf32>,
    return
  }
  func.func @transform_0(%arg0: i32) -> (i32, i32) {
    %c0_i32 = arith.constant 0 : i32
    %c0_i32_0 = arith.constant 0 : i32
    return %arg0, %c0_i32 : i32, i32
  }
  func.func @transform_1(%arg0: i32) -> (i32, i32) {
    %c0_i32 = arith.constant 0 : i32
    %c0_i32_0 = arith.constant 0 : i32
    %c0_i32_1 = arith.constant 0 : i32
    return %c0_i32, %c0_i32_0 : i32, i32
  }
  func.func @transform_2(%arg0: i32) -> (i32, i32) {
    %c0_i32 = arith.constant 0 : i32
    %c0_i32_0 = arith.constant 0 : i32
    %c0_i32_1 = arith.constant 0 : i32
    return %c0_i32, %c0_i32_0 : i32, i32
  }
  func.func @transform_3(%arg0: i32) -> (i32, i32) {
    %c0_i32 = arith.constant 0 : i32
    %c0_i32_0 = arith.constant 0 : i32
    %c0_i32_1 = arith.constant 0 : i32
    return %c0_i32, %c0_i32_0 : i32, i32
  }
  func.func @transform_4(%arg0: i32) -> (i32, i32) {
    %c0_i32 = arith.constant 0 : i32
    %c0_i32_0 = arith.constant 0 : i32
    %c0_i32_1 = arith.constant 0 : i32
    return %c0_i32, %c0_i32_0 : i32, i32
  }
  func.func @transform_5(%arg0: i32) -> (i32, i32) {
    %c0_i32 = arith.constant 0 : i32
    %c0_i32_0 = arith.constant 0 : i32
    %c0_i32_1 = arith.constant 0 : i32
    return %c0_i32, %c0_i32_0 : i32, i32
  }
  func.func @transform_6(%arg0: i32) -> (i32, i32) {
    %c0_i32 = arith.constant 0 : i32
    %c0_i32_0 = arith.constant 0 : i32
    %c0_i32_1 = arith.constant 0 : i32
    return %c0_i32, %c0_i32_0 : i32, i32
  }
  func.func @transform_7(%arg0: i32) -> (i32, i32) {
    %c0_i32 = arith.constant 0 : i32
    %c0_i32_0 = arith.constant 0 : i32
    %c0_i32_1 = arith.constant 0 : i32
    return %c0_i32, %c0_i32_0 : i32, i32
  }
  func.func @transform_8(%arg0: i32) -> (i32, i32) {
    %c0_i32 = arith.constant 0 : i32
    %c0_i32_0 = arith.constant 0 : i32
    %c0_i32_1 = arith.constant 0 : i32
    return %c0_i32, %c0_i32_0 : i32, i32
  }
  func.func @transform_9(%arg0: i32) -> (i32, i32) {
    %c0_i32 = arith.constant 0 : i32
    %c0_i32_0 = arith.constant 0 : i32
    %c0_i32_1 = arith.constant 0 : i32
    return %c0_i32, %c0_i32_0 : i32, i32
  }
  func.func @transform_10(%arg0: i32) -> (i32, i32) {
    %c0_i32 = arith.constant 0 : i32
    %c0_i32_0 = arith.constant 0 : i32
    %c0_i32_1 = arith.constant 0 : i32
    return %c0_i32, %c0_i32_0 : i32, i32
  }
  func.func @transform_11(%arg0: i32) -> (i32, i32) {
    %c0_i32 = arith.constant 0 : i32
    %c0_i32_0 = arith.constant 0 : i32
    return %arg0, %c0_i32 : i32, i32
  }
  func.func @transform_12(%arg0: i32) -> (i32, i32) {
    %c0_i32 = arith.constant 0 : i32
    %c0_i32_0 = arith.constant 0 : i32
    return %arg0, %c0_i32 : i32, i32
  }
}

</mosaic_0001>

<llo_original>
// kernel: tpu_custom_call.1
$region0: #{tpu_custom_call.1}
  #allocation0 [shape = 'u32[]', space=smem, size = 0x4, offset = 0x4, fixed_abs, tag = 'smem constant byte address 0x4 - core index']
  #allocation1 [shape = 'u32[72,128]{1,0:T(1,128)}', space=vmem, size = 0x9000, scoped, tag = 'internal scratch']
  %s0 = inlined_call_operand.hbm [shape: f32[2,32], index: 0, kind: input, shape index: {}]
  %s1 = inlined_call_operand.vmem [shape: bf16[32,32], index: 1, kind: input, shape index: {}]
  %s2 = inlined_call_operand.hbm [shape: f32[1,32], index: 2, kind: input, shape index: {}]
  %s3 = inlined_call_operand.vmem [shape: bf16[32,16], index: 3, kind: input, shape index: {}]
  %s4 = inlined_call_operand.hbm [shape: f32[1,16], index: 4, kind: input, shape index: {}]
  %s5 = inlined_call_operand.hbm [shape: bf16[16,32], index: 5, kind: input, shape index: {}]
  %s6 = inlined_call_operand.hbm [shape: f32[1,32], index: 6, kind: input, shape index: {}]
  %s7 = inlined_call_operand.hbm [shape: bf16[32,32], index: 7, kind: input, shape index: {}]
  %s8 = inlined_call_operand.hbm [shape: f32[1,32], index: 8, kind: input, shape index: {}]
  %s9 = inlined_call_operand.vmem [shape: bf16[32,128], index: 9, kind: input, shape index: {}]
  %s10 = inlined_call_operand.vmem [shape: f32[1,128], index: 10, kind: input, shape index: {}]
  %s11 = inlined_call_operand.hbm [shape: f32[2,32], index: 11, kind: output, shape index: {0}]
  %s12 = inlined_call_operand.hbm [shape: f32[2,128], index: 12, kind: output, shape index: {1}]
  %13 = xla_tuple %s11, %s12
  %s14 = sld [smem:[#allocation0]]
  $region90: #{tpu_custom_call.1} parent=0
    _
  %s16 = ssub.s32 1, %s14
  %s17 = scalar_select 0, %s16, %s14
  $region1: #{tpu_custom_call.1} parent=0
    #allocation2 [shape = 'u8[1024]{0}', space=vmem, size = 0x400, scoped, tag = 'input window, operand 0, single buffered']
    #allocation3 [shape = 's32[1]{0}', space=sflag, size = 0x4, scoped, tag = 'scoped memory for tpu_custom_call.1']
    #allocation4 [shape = 's32[1]{0}', space=sflag, size = 0x4, scoped, tag = 'scoped memory for tpu_custom_call.1']
    #allocation5 [shape = 'u8[512]{0}', space=vmem, size = 0x400, scoped, tag = 'input window, operand 2, single buffered']
    #allocation6 [shape = 's32[1]{0}', space=sflag, size = 0x4, scoped, tag = 'scoped memory for tpu_custom_call.1']
    #allocation7 [shape = 'u8[512]{0}', space=vmem, size = 0x400, scoped, tag = 'input window, operand 4, single buffered']
    #allocation8 [shape = 'u8[4096]{0}', space=vmem, size = 0x1000, scoped, tag = 'input window, operand 5, single buffered']
    #allocation9 [shape = 's32[1]{0}', space=sflag, size = 0x4, scoped, tag = 'scoped memory for tpu_custom_call.1']
    #allocation10 [shape = 'u8[512]{0}', space=vmem, size = 0x400, scoped, tag = 'input window, operand 6, single buffered']
    #allocation11 [shape = 'u8[8192]{0}', space=vmem, size = 0x2000, scoped, tag = 'input window, operand 7, single buffered']
    #allocation12 [shape = 's32[1]{0}', space=sflag, size = 0x4, scoped, tag = 'scoped memory for tpu_custom_call.1']
    #allocation13 [shape = 'u8[512]{0}', space=vmem, size = 0x400, scoped, tag = 'input window, operand 8, single buffered']
    #allocation14 [shape = 'u8[1024]{0}', space=vmem, size = 0x400, scoped, tag = 'output window, operand 0, single buffered']
    #allocation15 [shape = 'u8[1024]{0}', space=vmem, size = 0x400, scoped, tag = 'output window, operand 1, single buffered']
    #allocation16 [shape = 's32[1]{0}', space=sflag, size = 0x4, scoped, tag = 'scoped memory for tpu_custom_call.1']
    %18 = vsyncpa [#allocation3], 0
    %19 = vsyncpa [#allocation6], 0
    %20 = vsyncpa [#allocation9], 0
    %21 = vsyncpa [#allocation12], 0
    %22 = vsyncpa [#allocation4], 0
    %23 = vsyncpa [#allocation16], 0
    // Predicated region
    $region2: #{tpu_custom_call.1} parent=1 // pred_check
      _
    $region3: #{tpu_custom_call.1} parent=1 // pred_check_branch
      %25 = sbr.rel (0) target = $region5
    $region4: #{tpu_custom_call.1} parent=1 // pred_region
      %27 = vsyncadd [#allocation3], 0
      %s29 = sshll.u32 %s0, 4
      %s30 = int_to_ptr.hbm [resolvable:$true] %s29
      %s31 = sshll.u32 [#allocation2], 4
      %s32 = int_to_ptr.vmem [resolvable:$true] %s31
      %34 = dma.hbm_to_vmem [thread:$0]  %s30, 32, %s32, [#allocation3]
    $region5: #{tpu_custom_call.1} parent=1 // pred_fallthru
      _
    // Predicated region
    $region6: #{tpu_custom_call.1} parent=1 // pred_check
      _
    $region7: #{tpu_custom_call.1} parent=1 // pred_check_branch
      %36 = sbr.rel (0) target = $region9
    $region8: #{tpu_custom_call.1} parent=1 // pred_region
      _
    $region9: #{tpu_custom_call.1} parent=1 // pred_fallthru
      _
    // Predicated region
    $region10: #{tpu_custom_call.1} parent=1 // pred_check
      _
    $region11: #{tpu_custom_call.1} parent=1 // pred_check_branch
      %38 = sbr.rel (0) target = $region13
    $region12: #{tpu_custom_call.1} parent=1 // pred_region
      %40 = vsyncadd [#allocation6], 0
      %s42 = sshll.u32 %s2, 4
      %s43 = int_to_ptr.hbm [resolvable:$true] %s42
      %s44 = sshll.u32 [#allocation5], 4
      %s45 = int_to_ptr.vmem [resolvable:$true] %s44
      %47 = dma.hbm_to_vmem [thread:$0]  %s43, 16, %s45, [#allocation6]
    $region13: #{tpu_custom_call.1} parent=1 // pred_fallthru
      _
    // Predicated region
    $region14: #{tpu_custom_call.1} parent=1 // pred_check
      _
    $region15: #{tpu_custom_call.1} parent=1 // pred_check_branch
      %49 = sbr.rel (0) target = $region17
    $region16: #{tpu_custom_call.1} parent=1 // pred_region
      _
    $region17: #{tpu_custom_call.1} parent=1 // pred_fallthru
      _
    // Predicated region
    $region18: #{tpu_custom_call.1} parent=1 // pred_check
      _
    $region19: #{tpu_custom_call.1} parent=1 // pred_check_branch
      %51 = sbr.rel (0) target = $region21
    $region20: #{tpu_custom_call.1} parent=1 // pred_region
      %53 = vsyncadd [#allocation6], 0
      %s55 = sshll.u32 %s4, 4
      %s56 = int_to_ptr.hbm [resolvable:$true] %s55
      %s57 = sshll.u32 [#allocation7], 4
      %s58 = int_to_ptr.vmem [resolvable:$true] %s57
      %60 = dma.hbm_to_vmem [thread:$0]  %s56, 16, %s58, [#allocation6]
    $region21: #{tpu_custom_call.1} parent=1 // pred_fallthru
      _
    // Predicated region
    $region22: #{tpu_custom_call.1} parent=1 // pred_check
      _
    $region23: #{tpu_custom_call.1} parent=1 // pred_check_branch
      %62 = sbr.rel (0) target = $region25
    $region24: #{tpu_custom_call.1} parent=1 // pred_region
      %64 = vsyncadd [#allocation9], 0
      %s65 = sshll.u32 %s5, 4
      %s66 = int_to_ptr.hbm [resolvable:$true] %s65
      %s67 = sshll.u32 [#allocation8], 4
      %s68 = int_to_ptr.vmem [resolvable:$true] %s67
      %73 = dma.hbm_to_vmem [thread:$0]  %s66, 128, %s68, [#allocation9], 64, 64, 4
    $region25: #{tpu_custom_call.1} parent=1 // pred_fallthru
      _
    // Predicated region
    $region26: #{tpu_custom_call.1} parent=1 // pred_check
      _
    $region27: #{tpu_custom_call.1} parent=1 // pred_check_branch
      %75 = sbr.rel (0) target = $region29
    $region28: #{tpu_custom_call.1} parent=1 // pred_region
      %77 = vsyncadd [#allocation9], 0
      %s79 = sshll.u32 %s6, 4
      %s80 = int_to_ptr.hbm [resolvable:$true] %s79
      %s81 = sshll.u32 [#allocation10], 4
      %s82 = int_to_ptr.vmem [resolvable:$true] %s81
      %84 = dma.hbm_to_vmem [thread:$0]  %s80, 16, %s82, [#allocation9]
    $region29: #{tpu_custom_call.1} parent=1 // pred_fallthru
      _
    // Predicated region
    $region30: #{tpu_custom_call.1} parent=1 // pred_check
      _
    $region31: #{tpu_custom_call.1} parent=1 // pred_check_branch
      %86 = sbr.rel (0) target = $region33
    $region32: #{tpu_custom_call.1} parent=1 // pred_region
      %88 = vsyncadd [#allocation12], 0
      %s89 = sshll.u32 %s7, 4
      %s90 = int_to_ptr.hbm [resolvable:$true] %s89
      %s91 = sshll.u32 [#allocation11], 4
      %s92 = int_to_ptr.vmem [resolvable:$true] %s91
      %97 = dma.hbm_to_vmem [thread:$0]  %s90, 256, %s92, [#allocation12], 64, 64, 4
    $region33: #{tpu_custom_call.1} parent=1 // pred_fallthru
      _
    // Predicated region
    $region34: #{tpu_custom_call.1} parent=1 // pred_check
      _
    $region35: #{tpu_custom_call.1} parent=1 // pred_check_branch
      %99 = sbr.rel (0) target = $region37
    $region36: #{tpu_custom_call.1} parent=1 // pred_region
      %101 = vsyncadd [#allocation12], 0
      %s103 = sshll.u32 %s8, 4
      %s104 = int_to_ptr.hbm [resolvable:$true] %s103
      %s105 = sshll.u32 [#allocation13], 4
      %s106 = int_to_ptr.vmem [resolvable:$true] %s105
      %108 = dma.hbm_to_vmem [thread:$0]  %s104, 16, %s106, [#allocation12]
    $region37: #{tpu_custom_call.1} parent=1 // pred_fallthru
      _
    // Predicated region
    $region38: #{tpu_custom_call.1} parent=1 // pred_check
      _
    $region39: #{tpu_custom_call.1} parent=1 // pred_check_branch
      %110 = sbr.rel (0) target = $region41
    $region40: #{tpu_custom_call.1} parent=1 // pred_region
      _
    $region41: #{tpu_custom_call.1} parent=1 // pred_fallthru
      _
    // Predicated region
    $region42: #{tpu_custom_call.1} parent=1 // pred_check
      _
    $region43: #{tpu_custom_call.1} parent=1 // pred_check_branch
      %112 = sbr.rel (0) target = $region45
    $region44: #{tpu_custom_call.1} parent=1 // pred_region
      _
    $region45: #{tpu_custom_call.1} parent=1 // pred_fallthru
      _
    // Predicated region
    $region46: #{tpu_custom_call.1} parent=1 // pred_check
      _
    $region47: #{tpu_custom_call.1} parent=1 // pred_check_branch
      %114 = sbr.rel (0) target = $region49
    $region48: #{tpu_custom_call.1} parent=1 // pred_region
      %116 = dma.done [#allocation3], 32
    $region49: #{tpu_custom_call.1} parent=1 // pred_fallthru
      _
    // Predicated region
    $region50: #{tpu_custom_call.1} parent=1 // pred_check
      _
    $region51: #{tpu_custom_call.1} parent=1 // pred_check_branch
      %118 = sbr.rel (0) target = $region53
    $region52: #{tpu_custom_call.1} parent=1 // pred_region
      %120 = dma.done [#allocation6], 16
    $region53: #{tpu_custom_call.1} parent=1 // pred_fallthru
      _
    // Predicated region
    $region54: #{tpu_custom_call.1} parent=1 // pred_check
      _
    $region55: #{tpu_custom_call.1} parent=1 // pred_check_branch
      %122 = sbr.rel (0) target = $region57
    $region56: #{tpu_custom_call.1} parent=1 // pred_region
      %124 = dma.done [#allocation6], 16
    $region57: #{tpu_custom_call.1} parent=1 // pred_fallthru
      _
    // Predicated region
    $region58: #{tpu_custom_call.1} parent=1 // pred_check
      _
    $region59: #{tpu_custom_call.1} parent=1 // pred_check_branch
      %126 = sbr.rel (0) target = $region61
    $region60: #{tpu_custom_call.1} parent=1 // pred_region
      %128 = dma.done [#allocation9], 128
    $region61: #{tpu_custom_call.1} parent=1 // pred_fallthru
      _
    // Predicated region
    $region62: #{tpu_custom_call.1} parent=1 // pred_check
      _
    $region63: #{tpu_custom_call.1} parent=1 // pred_check_branch
      %130 = sbr.rel (0) target = $region65
    $region64: #{tpu_custom_call.1} parent=1 // pred_region
      %132 = dma.done [#allocation9], 16
    $region65: #{tpu_custom_call.1} parent=1 // pred_fallthru
      _
    // Predicated region
    $region66: #{tpu_custom_call.1} parent=1 // pred_check
      _
    $region67: #{tpu_custom_call.1} parent=1 // pred_check_branch
      %134 = sbr.rel (0) target = $region69
    $region68: #{tpu_custom_call.1} parent=1 // pred_region
      %136 = dma.done [#allocation12], 256
    $region69: #{tpu_custom_call.1} parent=1 // pred_fallthru
      _
    // Predicated region
    $region70: #{tpu_custom_call.1} parent=1 // pred_check
      _
    $region71: #{tpu_custom_call.1} parent=1 // pred_check_branch
      %138 = sbr.rel (0) target = $region73
    $region72: #{tpu_custom_call.1} parent=1 // pred_region
      %140 = dma.done [#allocation12], 16
    $region73: #{tpu_custom_call.1} parent=1 // pred_fallthru
      _
    %v142 = vld [vmem:[#allocation2] sm:$0x3]
    %v143 = vpack.c.bf16 %v142, %v142
    %v144 = vld [vmem:[%s1] sm:$0xf]
    %v145 = vld [vmem:[%s1 + $0x4] sm:$0xf]
    %v146 = vld [vmem:[%s1 + $0x8] sm:$0xf]
    %v147 = vld [vmem:[%s1 + $0xc] sm:$0xf]
    %v148 = vld [vmem:[#allocation5] sm:$0x1]
    %v150 = vperm.slane %v148, 0
    %v156 = vunpack.c.l.b16 %v144
    %v157 = vunpack.c.l.b16 %v145
    %v158 = vunpack.c.l.b16 %v146
    %v159 = vunpack.c.l.b16 %v147
    %v160 = vpack.c.b16 %v157, %v156
    %v161 = vpack.c.b16 %v159, %v158
    %vm164 = vcmask 261120
    %v166 = vsel %vm164, %v143, 0
    %168 = vmatpush.bf16.msra.mxu0 0
    %169 = vmatpush.bf16.msra.mxu0 0
    %170 = vmatpush.bf16.msra.mxu0 0
    %171 = vmatpush.bf16.msra.mxu0 0
    %172 = vmatpush.bf16.msra.mxu0 0
    %173 = vmatpush.bf16.msra.mxu0 0
    %174 = vmatpush.bf16.msra.mxu0 %v161
    %175 = vmatpush.bf16.msra.mxu0 %v160
    %176 = vmatmul.bf16.gmra.mxu0 %v166
    %v177 = vpop.f32.mrf.mxu0
    %v178 = vadd.f32 %v150, %v177
    %v179 = vpop.f32.mrf.mxu0
    %180 = vdwg.mxu0
    %v181 = vmax.f32 %v178, 0.0
    %v182 = vpack.c.bf16 %v181, %v181
    %v183 = vld [vmem:[%s3] sm:$0xf]
    %v184 = vld [vmem:[%s3 + $0x4] sm:$0xf]
    %v185 = vld [vmem:[%s3 + $0x8] sm:$0xf]
    %v186 = vld [vmem:[%s3 + $0xc] sm:$0xf]
    %v187 = vld [vmem:[#allocation7] sm:$0x1]
    %v189 = vperm.slane %v187, 0
    %v195 = vunpack.c.l.b16 %v183
    %v196 = vunpack.c.l.b16 %v184
    %v197 = vunpack.c.l.b16 %v185
    %v198 = vunpack.c.l.b16 %v186
    %v199 = vpack.c.b16 %v196, %v195
    %v200 = vpack.c.b16 %v198, %v197
    %v204 = vsel %vm164, %v182, 0
    %206 = vmatpush.bf16.msra.mxu0 0
    %207 = vmatpush.bf16.msra.mxu0 0
    %208 = vmatpush.bf16.msra.mxu0 0
    %209 = vmatpush.bf16.msra.mxu0 0
    %210 = vmatpush.bf16.msra.mxu0 0
    %211 = vmatpush.bf16.msra.mxu0 0
    %212 = vmatpush.bf16.msra.mxu0 %v200
    %213 = vmatpush.bf16.msra.mxu0 %v199
    %214 = vmatmul.bf16.gmra.mxu0 %v204
    %v215 = vpop.f32.mrf.mxu0
    %v216 = vadd.f32 %v189, %v215
    %v217 = vpop.f32.mrf.mxu0
    %218 = vdwg.mxu0
    %v219 = vmax.f32 %v216, 0.0
    %v220 = vpack.c.bf16 %v219, %v219
    %v221 = vld [vmem:[#allocation8] sm:$0xf]
    %v222 = vld [vmem:[#allocation8 + $0x4] sm:$0xf]
    %v223 = vld [vmem:[#allocation10] sm:$0x1]
    %v225 = vperm.slane %v223, 0
    %v229 = vunpack.c.l.b16 %v221
    %v230 = vunpack.c.l.b16 %v222
    %v231 = vpack.c.b16 %v230, %v229
    %vm233 = vcmask 130048
    %v235 = vsel %vm233, %v220, 0
    %237 = vmatpush.bf16.msra.mxu0 0
    %238 = vmatpush.bf16.msra.mxu0 0
    %239 = vmatpush.bf16.msra.mxu0 0
    %240 = vmatpush.bf16.msra.mxu0 0
    %241 = vmatpush.bf16.msra.mxu0 0
    %242 = vmatpush.bf16.msra.mxu0 0
    %243 = vmatpush.bf16.msra.mxu0 0
    %244 = vmatpush.bf16.msra.mxu0 %v231
    %245 = vmatmul.bf16.gmra.mxu0 %v235
    %v246 = vpop.f32.mrf.mxu0
    %v247 = vadd.f32 %v225, %v246
    %v248 = vpop.f32.mrf.mxu0
    %249 = vdwg.mxu0
    %vm250 = vcmask 254976
    %251 = vst.msk [vmem:[#allocation14] sm:$0x3] %vm250, %v247
    %v252 = vld [vmem:[#allocation11] sm:$0xf]
    %v253 = vld [vmem:[#allocation11 + $0x4] sm:$0xf]
    %v254 = vld [vmem:[#allocation11 + $0x8] sm:$0xf]
    %v255 = vld [vmem:[#allocation11 + $0xc] sm:$0xf]
    %v256 = vld [vmem:[#allocation13] sm:$0x1]
    %v258 = vperm.slane %v256, 0
    %v264 = vunpack.c.l.b16 %v252
    %v265 = vunpack.c.l.b16 %v253
    %v266 = vunpack.c.l.b16 %v254
    %v267 = vunpack.c.l.b16 %v255
    %v268 = vpack.c.b16 %v265, %v264
    %v269 = vpack.c.b16 %v267, %v266
    %272 = vmatpush.bf16.msra.mxu0 0
    %273 = vmatpush.bf16.msra.mxu0 0
    %274 = vmatpush.bf16.msra.mxu0 0
    %275 = vmatpush.bf16.msra.mxu0 0
    %276 = vmatpush.bf16.msra.mxu0 0
    %277 = vmatpush.bf16.msra.mxu0 0
    %278 = vmatpush.bf16.msra.mxu0 %v269
    %279 = vmatpush.bf16.msra.mxu0 %v268
    %280 = vmatmul.bf16.gmra.mxu0 %v166
    %v281 = vpop.f32.mrf.mxu0
    %v282 = vadd.f32 %v258, %v281
    %v283 = vpop.f32.mrf.mxu0
    %284 = vdwg.mxu0
    %v285 = vmax.f32 %v282, 0.0
    %v286 = vpack.c.bf16 %v285, %v285
    %v287 = vld [vmem:[%s9] sm:$0xf]
    %v288 = vld [vmem:[%s9 + $0x4] sm:$0xf]
    %v289 = vld [vmem:[%s9 + $0x8] sm:$0xf]
    %v290 = vld [vmem:[%s9 + $0xc] sm:$0xf]
    %v291 = vld [vmem:[%s10] sm:$0x1]
    %v293 = vperm.slane %v291, 0
    %v299 = vunpack.c.l.b16 %v287
    %v300 = vunpack.c.l.b16 %v288
    %v301 = vunpack.c.l.b16 %v289
    %v302 = vunpack.c.l.b16 %v290
    %v303 = vpack.c.b16 %v300, %v299
    %v304 = vpack.c.b16 %v302, %v301
    %v308 = vsel %vm164, %v286, 0
    %310 = vmatpush.bf16.msra.mxu0 0
    %311 = vmatpush.bf16.msra.mxu0 0
    %312 = vmatpush.bf16.msra.mxu0 0
    %313 = vmatpush.bf16.msra.mxu0 0
    %314 = vmatpush.bf16.msra.mxu0 0
    %315 = vmatpush.bf16.msra.mxu0 0
    %316 = vmatpush.bf16.msra.mxu0 %v304
    %317 = vmatpush.bf16.msra.mxu0 %v303
    %318 = vmatmul.bf16.gmra.mxu0 %v308
    %v319 = vpop.f32.mrf.mxu0
    %v320 = vadd.f32 %v293, %v319
    %v321 = vpop.f32.mrf.mxu0
    %322 = vdwg.mxu0
    %v323 = vlaneseq
    %v324 = vand.u32 %v323, 127
    %vm325 = vcmp.lt.s32.totalorder %v324, 15
    %v326 = vxor.u32 %v320, 2147483648
    %v327 = vmul.f32 %v326, 1.442695
    %v328 = vpow.pop %v327
    %v329 = vadd.f32 %v328, 1.0
    %v330 = vrcp.pop %v329
    %v331 = vmul.f32 %v329, %v330
    %v332 = vsub.f32 1.0, %v331
    %v333 = vmul.f32 %v330, %v332
    %v334 = vadd.f32 %v330, %v333
    %vm335 = vweird.f32 %v329
    %vm336 = vweird.f32 %v330
    %vm337 = vmor %vm335, %vm336
    %v338 = vsel %vm337, %v330, %v334
    %v339 = vand.u32 2147483647, %v329
    %vm340 = vcmp.eq.f32.partialorder %v339, 8.507059e+37
    %v341 = vand.u32 %v329, 2147483648
    %v342 = vor.u32 1.1754944e-38, %v341
    %v343 = vsel %vm340, %v342, %v338
    %v344 = vmul.f32 1.0, %v343
    %v345 = vsel %vm325, %v344, %v320
    %346 = vst [vmem:[#allocation15] sm:$0x3] %v345
    // Predicated region
    $region74: #{tpu_custom_call.1} parent=1 // pred_check
      _
    $region75: #{tpu_custom_call.1} parent=1 // pred_check_branch
      %348 = sbr.rel (0) target = $region77
    $region76: #{tpu_custom_call.1} parent=1 // pred_region
      %350 = vsyncadd [#allocation4], 0
      %s352 = sshll.u32 [#allocation14], 4
      %s353 = int_to_ptr.vmem [resolvable:$true] %s352
      %s354 = sshll.u32 %s11, 4
      %s355 = int_to_ptr.hbm [resolvable:$true] %s354
      %357 = dma.vmem_to_hbm [thread:$0]  %s353, 32, %s355, [#allocation4]
    $region77: #{tpu_custom_call.1} parent=1 // pred_fallthru
      _
    // Predicated region
    $region78: #{tpu_custom_call.1} parent=1 // pred_check
      _
    $region79: #{tpu_custom_call.1} parent=1 // pred_check_branch
      %359 = sbr.rel (0) target = $region81
    $region80: #{tpu_custom_call.1} parent=1 // pred_region
      %361 = vsyncadd [#allocation16], 0
      %s363 = sshll.u32 [#allocation15], 4
      %s364 = int_to_ptr.vmem [resolvable:$true] %s363
      %s365 = sshll.u32 %s12, 4
      %s366 = int_to_ptr.hbm [resolvable:$true] %s365
      %368 = dma.vmem_to_hbm [thread:$0]  %s364, 32, %s366, [#allocation16]
    $region81: #{tpu_custom_call.1} parent=1 // pred_fallthru
      _
    // Predicated region
    $region82: #{tpu_custom_call.1} parent=1 // pred_check
      _
    $region83: #{tpu_custom_call.1} parent=1 // pred_check_branch
      %370 = sbr.rel (0) target = $region85
    $region84: #{tpu_custom_call.1} parent=1 // pred_region
      %372 = dma.done [#allocation4], 32
    $region85: #{tpu_custom_call.1} parent=1 // pred_fallthru
      _
    // Predicated region
    $region86: #{tpu_custom_call.1} parent=1 // pred_check
      _
    $region87: #{tpu_custom_call.1} parent=1 // pred_check_branch
      %374 = sbr.rel (0) target = $region89
    $region88: #{tpu_custom_call.1} parent=1 // pred_region
      %376 = dma.done [#allocation16], 32
    $region89: #{tpu_custom_call.1} parent=1 // pred_fallthru
      _
    %377 = vsyncpa [#allocation3], 1
    %378 = vsyncpa [#allocation6], 1
    %379 = vsyncpa [#allocation9], 1
    %380 = vsyncpa [#allocation12], 1
    %381 = vsyncpa [#allocation4], 1
    %382 = vsyncpa [#allocation16], 1

</llo_original>
